<compile_context>
chip_gen: v6e
topology: v6e:2x2x1
jax: 0.10.0
libtpu: 0.0.40
codegen_flags: <defaults>
</compile_context>

<pallas_src>
import jax
import jax.numpy as jnp
from jax.experimental import pallas as pl
from jax.experimental.pallas import tpu as pltpu

EPS = 1e-12


def _sigma_kernel(w_ref, u_ref, sigma_ref, u_out_ref, v_out_ref):
    """One power iteration + sigma, entirely in VMEM.

    w_ref: (H, K)  flattened weight matrix (H = out_channels, K = C*kh*kw)
    u_ref: (1, H)  current left singular vector estimate (row layout)
    Outputs: sigma (1,1), u_new (H,1), v (1,K).  The normalized weight is NOT
    materialized here; only the scalar sigma leaves this kernel.
    """
    w = w_ref[...]                                    # (H, K) f32
    u = u_ref[...]                                    # (1, H) f32

    # v = l2normalize(W^T u)   (MXU mat-vec: (1,H) @ (H,K))
    v_raw = jax.lax.dot_general(
        u, w, dimension_numbers=(((1,), (0,)), ((), ())),
        preferred_element_type=jnp.float32)           # (1, K)
    v = v_raw / (jnp.sqrt(jnp.sum(v_raw * v_raw, keepdims=True)) + EPS)

    # u = l2normalize(W v)     (MXU mat-vec: (H,K) @ (K,1), A @ B^T form)
    wv = jax.lax.dot_general(
        w, v, dimension_numbers=(((1,), (1,)), ((), ())),
        preferred_element_type=jnp.float32)           # (H, 1)
    u_new = wv / (jnp.sqrt(jnp.sum(wv * wv, keepdims=True)) + EPS)

    # sigma = u_new . (W v)   (updated u and v, matching PyTorch)
    sigma_ref[...] = jnp.sum(u_new * wv, keepdims=True)   # (1, 1)
    u_out_ref[...] = u_new
    v_out_ref[...] = v


def _make_conv_kernel(kh, kw, pad, Wp, Q):
    """Direct conv on the flattened padded spatial axis (lane-dense output).

    Per batch element:
      out (O, Q) = (sum_{taps} W_tap (O,C) @ shifted_x (C, Q)) / sigma + bias
    with Q = Hp*Wp.  Each shifted slab is a static lane-offset slice of the
    flat-padded input block -- no in-kernel reshape/transpose, no im2col.
    """
    lpad = pad * Wp + pad                  # flat left-padding baked into zp

    def kernel(sigma_ref, zp_ref, w_ref, b_ref, o_ref):
        out_ch = o_ref.shape[1]
        acc = jnp.zeros((out_ch, Q), jnp.float32)
        for dh in range(kh):               # static unroll: kh*kw MXU matmuls
            for dw in range(kw):
                start = lpad + (dh - pad) * Wp + (dw - pad)   # static offset
                xs = zp_ref[0, :, start:start + Q]            # (C, Q)
                wk = w_ref[dh * kw + dw]                      # (O, C)
                acc = acc + jax.lax.dot_general(
                    wk, xs, dimension_numbers=(((1,), (0,)), ((), ())),
                    preferred_element_type=jnp.float32)
        inv_sigma = 1.0 / sigma_ref[...]                      # (1, 1) f32
        o_ref[0] = (acc * inv_sigma + b_ref[...]).astype(o_ref.dtype)

    return kernel


def spectral_norm_conv2d(x, w_bar, bias, u, v=None, *, padding=1,
                         compute_dtype=jnp.float32):
    """Forward of SpectralNorm(nn.Conv2d(C, O, kh, kw, padding=1)).

    Returns (y, u_new, v_new); y is NCHW.  The incoming `v` is unused
    (recomputed), matching the PyTorch module.
    """
    N, C, H, W = x.shape
    O, Cw, kh, kw = w_bar.shape
    assert Cw == C
    height, width = O, C * kh * kw
    w_mat = w_bar.reshape(height, width).astype(jnp.float32)

    # ---- Kernel 1: power iteration -> sigma, u, v (weight stays un-normalized)
    sigma, u_new, v_new = pl.pallas_call(
        _sigma_kernel,
        out_shape=(
            jax.ShapeDtypeStruct((1, 1), jnp.float32),
            jax.ShapeDtypeStruct((height, 1), jnp.float32),
            jax.ShapeDtypeStruct((1, width), jnp.float32),
        ),
        in_specs=[
            pl.BlockSpec(memory_space=pltpu.MemorySpace.VMEM),
            pl.BlockSpec(memory_space=pltpu.MemorySpace.VMEM),
        ],
        out_specs=(
            pl.BlockSpec(memory_space=pltpu.MemorySpace.VMEM),
            pl.BlockSpec(memory_space=pltpu.MemorySpace.VMEM),
            pl.BlockSpec(memory_space=pltpu.MemorySpace.VMEM),
        ),
    )(w_mat, u.reshape(1, height).astype(jnp.float32))

    # ---- Prep for kernel 2 (cheap JAX glue: zero-pad + contiguous reshape) ----
    p = padding
    Hp, Wp = H + 2 * p, W + 2 * p
    Q = Hp * Wp                                   # padded spatial positions
    lpad = p * Wp + p                             # max negative tap shift
    rpad = (kh - 1 - p) * Wp + (kw - 1 - p)       # max positive tap shift
    Qp = Q + lpad + rpad

    xp = jnp.pad(x.astype(jnp.float32), ((0, 0), (0, 0), (p, p), (p, p)))
    zp = jnp.pad(xp.reshape(N, C, Q), ((0, 0), (0, 0), (lpad, rpad)))
    zp = zp.astype(compute_dtype)                 # (N, C, Qp)

    # Weight taps laid out (kh*kw, O, C): tap t = dh*kw + dw -> W_bar[:, :, dh, dw]
    w_taps = jnp.transpose(w_bar, (2, 3, 0, 1)).reshape(kh * kw, O, C)
    w_taps = w_taps.astype(compute_dtype)

    conv_kernel = _make_conv_kernel(kh, kw, p, Wp, Q)

    # ---- Kernel 2: conv with fused 1/sigma + bias, lane-dense (N, O, Q) out ----
    out_flat = pl.pallas_call(
        conv_kernel,
        out_shape=jax.ShapeDtypeStruct((N, O, Q), jnp.float32),
        grid=(N,),
        in_specs=[
            pl.BlockSpec((1, 1), lambda n: (0, 0)),              # sigma (resident)
            pl.BlockSpec((1, C, Qp), lambda n: (n, 0, 0)),       # padded x, per batch
            pl.BlockSpec((kh * kw, O, C), lambda n: (0, 0, 0)),  # weight taps (resident)
            pl.BlockSpec((O, 1), lambda n: (0, 0)),              # bias (resident)
        ],
        out_specs=pl.BlockSpec((1, O, Q), lambda n: (n, 0, 0)),
        compiler_params=pltpu.CompilerParams(
            dimension_semantics=("parallel",)),
    )(sigma, zp, w_taps, bias.reshape(O, 1).astype(jnp.float32))

    # Crop the padded-grid result to the valid NCHW output (cheap XLA slice).
    Ho = H + 2 * p - kh + 1
    Wo = W + 2 * p - kw + 1
    y = out_flat.reshape(N, O, Hp, Wp)[:, :, p:p + Ho, p:p + Wo]
    return y, u_new.reshape(height), v_new.reshape(width)


def _reference(x, w_bar, bias, u):
    """Pure-JAX reference mirroring the PyTorch module."""
    h = w_bar.shape[0]
    wm = w_bar.reshape(h, -1)
    v = wm.T @ u
    v = v / (jnp.linalg.norm(v) + EPS)
    u2 = wm @ v
    u2 = u2 / (jnp.linalg.norm(u2) + EPS)
    sigma = u2 @ (wm @ v)
    w = w_bar / sigma
    y = jax.lax.conv_general_dilated(
        x, w, window_strides=(1, 1), padding=((1, 1), (1, 1)),
        dimension_numbers=("NCHW", "OIHW", "NCHW"))
    return y + bias.reshape(1, -1, 1, 1), u2, v


if __name__ == "__main__":
    key = jax.random.PRNGKey(0)
    kx, kwt, kb, ku, kv = jax.random.split(key, 5)

    N, C, H, W = 2, 4, 16, 16
    O, kh, kw_sz = 8, 3, 3

    x = jax.random.normal(kx, (N, C, H, W), dtype=jnp.float32)
    w_bar = jax.random.normal(kwt, (O, C, kh, kw_sz), dtype=jnp.float32) * 0.1
    bias = jax.random.normal(kb, (O,), dtype=jnp.float32) * 0.1

    # u, v initialized as in SpectralNorm._make_params: N(0,1) then l2normalize
    u0 = jax.random.normal(ku, (O,), dtype=jnp.float32)
    u0 = u0 / (jnp.linalg.norm(u0) + EPS)
    v0 = jax.random.normal(kv, (C * kh * kw_sz,), dtype=jnp.float32)
    v0 = v0 / (jnp.linalg.norm(v0) + EPS)

    y, u_new, v_new = spectral_norm_conv2d(x, w_bar, bias, u0, v0)
    y = jax.block_until_ready(y)

    y_ref, u_ref, v_ref = _reference(x, w_bar, bias, u0)
    assert y.shape == (N, O, H, W)
    max_err = float(jnp.max(jnp.abs(y - y_ref)))
    assert jnp.allclose(y, y_ref, atol=2e-4, rtol=2e-4), max_err
    assert jnp.allclose(u_new, u_ref, atol=2e-4, rtol=2e-4)
    assert jnp.allclose(v_new, v_ref, atol=2e-4, rtol=2e-4)

    print("KERNEL_OK")
</pallas_src>

<mosaic_0001>
module attributes {stable_mosaic.version = 11 : i64} {
  func.func @_sigma_kernel(%arg0: memref<8x36xf32, #tpu.memory_space<vmem>>, %arg1: memref<1x8xf32, #tpu.memory_space<vmem>>, %arg2: memref<1x1xf32, #tpu.memory_space<vmem>>, %arg3: memref<8x1xf32, #tpu.memory_space<vmem>>, %arg4: memref<1x36xf32, #tpu.memory_space<vmem>>) attributes {dimension_semantics = [], scalar_prefetch = 0 : i64, scratch_operands = 0 : i64, tpu.core_type = #tpu.core_type<tc>} {
    %c0 = arith.constant 0 : index
    %c0_0 = arith.constant 0 : index
    %0 = vector.load %arg0[%c0, %c0_0] : memref<8x36xf32, #tpu.memory_space<vmem>>, vector<8x36xf32>
    %c0_1 = arith.constant 0 : index
    %c0_2 = arith.constant 0 : index
    %1 = vector.load %arg1[%c0_1, %c0_2] : memref<1x8xf32, #tpu.memory_space<vmem>>, vector<1x8xf32>
    %cst = arith.constant dense<0.000000e+00> : vector<1x36xf32>
    %2 = tpu.matmul %1, %0, %cst {dimension_numbers = #tpu.dot_dimension_numbers<[1], [0], [0], [1], [0, 0, 1, 1], [], []>} : vector<1x8xf32>, vector<8x36xf32>, vector<1x36xf32> -> vector<1x36xf32>
    %3 = arith.mulf %2, %2 : vector<1x36xf32>
    %4 = vector.shape_cast %3 : vector<1x36xf32> to vector<1x1x36xf32>
    %cst_3 = arith.constant dense<0.000000e+00> : vector<1xf32>
    %5 = vector.multi_reduction <add>, %4, %cst_3 [1, 2] : vector<1x1x36xf32> to vector<1xf32>
    %6 = vector.shape_cast %5 : vector<1xf32> to vector<1x1x1xf32>
    %7 = vector.extract %6[0, 0, 0] : f32 from vector<1x1x1xf32>
    %8 = vector.broadcast %7 : f32 to vector<1x1xf32>
    %9 = math.sqrt %8 : vector<1x1xf32>
    %cst_4 = arith.constant 9.99999996E-13 : f32
    %10 = vector.broadcast %cst_4 : f32 to vector<1x1xf32>
    %11 = arith.addf %9, %10 : vector<1x1xf32>
    %12 = vector.broadcast %11 : vector<1x1xf32> to vector<1x36xf32>
    %13 = arith.divf %2, %12 : vector<1x36xf32>
    %cst_5 = arith.constant dense<0.000000e+00> : vector<8x1xf32>
    %14 = tpu.matmul %0, %13, %cst_5 {dimension_numbers = #tpu.dot_dimension_numbers<[1], [1], [0], [0], [0, 0, 1, 0], [], []>} : vector<8x36xf32>, vector<1x36xf32>, vector<8x1xf32> -> vector<8x1xf32>
    %15 = arith.mulf %14, %14 : vector<8x1xf32>
    %16 = vector.shape_cast %15 : vector<8x1xf32> to vector<1x8x1xf32>
    %cst_6 = arith.constant dense<0.000000e+00> : vector<1xf32>
    %17 = vector.multi_reduction <add>, %16, %cst_6 [1, 2] : vector<1x8x1xf32> to vector<1xf32>
    %18 = vector.shape_cast %17 : vector<1xf32> to vector<1x1x1xf32>
    %19 = vector.extract %18[0, 0, 0] : f32 from vector<1x1x1xf32>
    %20 = vector.broadcast %19 : f32 to vector<1x1xf32>
    %21 = math.sqrt %20 : vector<1x1xf32>
    %cst_7 = arith.constant 9.99999996E-13 : f32
    %22 = vector.broadcast %cst_7 : f32 to vector<1x1xf32>
    %23 = arith.addf %21, %22 : vector<1x1xf32>
    %24 = vector.broadcast %23 : vector<1x1xf32> to vector<8x1xf32>
    %25 = arith.divf %14, %24 : vector<8x1xf32>
    %26 = arith.mulf %25, %14 : vector<8x1xf32>
    %27 = vector.shape_cast %26 : vector<8x1xf32> to vector<1x8x1xf32>
    %cst_8 = arith.constant dense<0.000000e+00> : vector<1xf32>
    %28 = vector.multi_reduction <add>, %27, %cst_8 [1, 2] : vector<1x8x1xf32> to vector<1xf32>
    %29 = vector.shape_cast %28 : vector<1xf32> to vector<1x1x1xf32>
    %30 = vector.extract %29[0, 0, 0] : f32 from vector<1x1x1xf32>
    %31 = vector.broadcast %30 : f32 to vector<1x1xf32>
    %c0_9 = arith.constant 0 : index
    %c0_10 = arith.constant 0 : index
    %32 = vector.load %arg2[%c0_9, %c0_10] : memref<1x1xf32, #tpu.memory_space<vmem>>, vector<1x1xf32>
    tpu.vector_store %arg2[%c0_9, %c0_10], %31 {strides = array<i32>} : memref<1x1xf32, #tpu.memory_space<vmem>>, vector<1x1xf32>,
    %c0_11 = arith.constant 0 : index
    %c0_12 = arith.constant 0 : index
    %33 = vector.load %arg3[%c0_11, %c0_12] : memref<8x1xf32, #tpu.memory_space<vmem>>, vector<8x1xf32>
    tpu.vector_store %arg3[%c0_11, %c0_12], %25 {strides = array<i32>} : memref<8x1xf32, #tpu.memory_space<vmem>>, vector<8x1xf32>,
    %c0_13 = arith.constant 0 : index
    %c0_14 = arith.constant 0 : index
    %34 = vector.load %arg4[%c0_13, %c0_14] : memref<1x36xf32, #tpu.memory_space<vmem>>, vector<1x36xf32>
    tpu.vector_store %arg4[%c0_13, %c0_14], %13 {strides = array<i32>} : memref<1x36xf32, #tpu.memory_space<vmem>>, vector<1x36xf32>,
    return
  }
}

</mosaic_0001>

<llo_original>
// kernel: tpu_custom_call.1
$region0: #{tpu_custom_call.1}
  #allocation0 [shape = 'u32[]', space=smem, size = 0x4, offset = 0x4, fixed_abs, tag = 'smem constant byte address 0x4 - core index']
  #allocation1 [shape = 'u32[144,128]{1,0:T(1,128)}', space=vmem, size = 0x12000, scoped, tag = 'internal scratch']
  %s0 = inlined_call_operand.hbm [shape: f32[8,36], index: 0, kind: input, shape index: {}]
  %s1 = inlined_call_operand.vmem [shape: f32[1,8], index: 1, kind: input, shape index: {}]
  %s2 = inlined_call_operand.hbm [shape: f32[1,1], index: 2, kind: output, shape index: {0}]
  %s3 = inlined_call_operand.vmem [shape: f32[8,1], index: 3, kind: output, shape index: {1}]
  %s4 = inlined_call_operand.hbm [shape: f32[1,36], index: 4, kind: output, shape index: {2}]
  %5 = xla_tuple %s2, %s3, %s4
  %s6 = sld [smem:[#allocation0]]
  $region38: #{tpu_custom_call.1} parent=0
    _
  %s8 = ssub.s32 1, %s6
  %s9 = scalar_select 0, %s8, %s6
  $region1: #{tpu_custom_call.1} parent=0
    #allocation2 [shape = 'u8[4096]{0}', space=vmem, size = 0x1000, scoped, tag = 'input window, operand 0, single buffered']
    #allocation3 [shape = 's32[1]{0}', space=sflag, size = 0x4, scoped, tag = 'scoped memory for tpu_custom_call.1']
    #allocation4 [shape = 's32[1]{0}', space=sflag, size = 0x4, scoped, tag = 'scoped memory for tpu_custom_call.1']
    #allocation5 [shape = 'u8[512]{0}', space=vmem, size = 0x400, scoped, tag = 'output window, operand 0, single buffered']
    #allocation6 [shape = 'u8[512]{0}', space=vmem, size = 0x400, scoped, tag = 'output window, operand 2, single buffered']
    #allocation7 [shape = 's32[1]{0}', space=sflag, size = 0x4, scoped, tag = 'scoped memory for tpu_custom_call.1']
    %10 = vsyncpa [#allocation3], 0
    %11 = vsyncpa [#allocation4], 0
    %12 = vsyncpa [#allocation7], 0
    // Predicated region
    $region2: #{tpu_custom_call.1} parent=1 // pred_check
      _
    $region3: #{tpu_custom_call.1} parent=1 // pred_check_branch
      %14 = sbr.rel (0) target = $region5
    $region4: #{tpu_custom_call.1} parent=1 // pred_region
      %s16 = ssub.s32 128, 128
      %17 = vsyncadd [#allocation3], %s16
      %s19 = sshll.u32 [#allocation2], 4
      %s20 = int_to_ptr.vmem [resolvable:$true] %s19
      %22 = dma.hbm_to_vmem [thread:$0]  %s0, 128, %s20, [#allocation3]
    $region5: #{tpu_custom_call.1} parent=1 // pred_fallthru
      _
    // Predicated region
    $region6: #{tpu_custom_call.1} parent=1 // pred_check
      _
    $region7: #{tpu_custom_call.1} parent=1 // pred_check_branch
      %24 = sbr.rel (0) target = $region9
    $region8: #{tpu_custom_call.1} parent=1 // pred_region
      _
    $region9: #{tpu_custom_call.1} parent=1 // pred_fallthru
      _
    // Predicated region
    $region10: #{tpu_custom_call.1} parent=1 // pred_check
      _
    $region11: #{tpu_custom_call.1} parent=1 // pred_check_branch
      %26 = sbr.rel (0) target = $region13
    $region12: #{tpu_custom_call.1} parent=1 // pred_region
      %27 = dma.done [#allocation3], 128
    $region13: #{tpu_custom_call.1} parent=1 // pred_fallthru
      _
    %v28 = vld [vmem:[#allocation2] sm:$0xff]
    %v29 = vld [vmem:[%s1] sm:$0x1]
    %vm30 = vcmask 64512
    %v32 = vsel %vm30, %v29, 0
    %34 = vmatprep.subr.mxu0 0.0
    %35 = vmatpush1.msra.mxu0 0.0
    %36 = vmatprep.subr.mxu0 0.0
    %37 = vmatpush1.msra.mxu0 0.0
    %38 = vmatprep.subr.mxu0 0.0
    %39 = vmatpush1.msra.mxu0 0.0
    %40 = vmatprep.subr.mxu0 0.0
    %41 = vmatpush1.msra.mxu0 0.0
    %42 = vmatprep.subr.mxu0 0.0
    %43 = vmatpush1.msra.mxu0 0.0
    %44 = vmatprep.subr.mxu0 0.0
    %45 = vmatpush1.msra.mxu0 0.0
    %46 = vmatprep.subr.mxu0 0.0
    %47 = vmatpush1.msra.mxu0 0.0
    %48 = vmatprep.subr.mxu0 0.0
    %49 = vmatpush1.msra.mxu0 0.0
    %50 = vmatprep.subr.mxu0 0.0
    %51 = vmatpush1.msra.mxu0 0.0
    %52 = vmatprep.subr.mxu0 0.0
    %53 = vmatpush1.msra.mxu0 0.0
    %54 = vmatprep.subr.mxu0 0.0
    %55 = vmatpush1.msra.mxu0 0.0
    %56 = vmatprep.subr.mxu0 0.0
    %57 = vmatpush1.msra.mxu0 0.0
    %58 = vmatprep.subr.mxu0 0.0
    %59 = vmatpush1.msra.mxu0 0.0
    %60 = vmatprep.subr.mxu0 0.0
    %61 = vmatpush1.msra.mxu0 0.0
    %62 = vmatprep.subr.mxu0 0.0
    %63 = vmatpush1.msra.mxu0 0.0
    %64 = vmatprep.subr.mxu0 0.0
    %65 = vmatpush1.msra.mxu0 %v28
    %66 = vmatprep.subr.mxu0 0.0
    %67 = vmatpush2.msra.mxu0 0.0
    %68 = vmatprep.subr.mxu0 0.0
    %69 = vmatpush2.msra.mxu0 0.0
    %70 = vmatprep.subr.mxu0 0.0
    %71 = vmatpush2.msra.mxu0 0.0
    %72 = vmatprep.subr.mxu0 0.0
    %73 = vmatpush2.msra.mxu0 0.0
    %74 = vmatprep.subr.mxu0 0.0
    %75 = vmatpush2.msra.mxu0 0.0
    %76 = vmatprep.subr.mxu0 0.0
    %77 = vmatpush2.msra.mxu0 0.0
    %78 = vmatprep.subr.mxu0 0.0
    %79 = vmatpush2.msra.mxu0 0.0
    %80 = vmatprep.subr.mxu0 0.0
    %81 = vmatpush2.msra.mxu0 0.0
    %82 = vmatprep.subr.mxu0 0.0
    %83 = vmatpush2.msra.mxu0 0.0
    %84 = vmatprep.subr.mxu0 0.0
    %85 = vmatpush2.msra.mxu0 0.0
    %86 = vmatprep.subr.mxu0 0.0
    %87 = vmatpush2.msra.mxu0 0.0
    %88 = vmatprep.subr.mxu0 0.0
    %89 = vmatpush2.msra.mxu0 0.0
    %90 = vmatprep.subr.mxu0 0.0
    %91 = vmatpush2.msra.mxu0 0.0
    %92 = vmatprep.subr.mxu0 0.0
    %93 = vmatpush2.msra.mxu0 0.0
    %94 = vmatprep.subr.mxu0 0.0
    %95 = vmatpush2.msra.mxu0 0.0
    %96 = vmatprep.subr.mxu0 0.0
    %97 = vmatpush2.msra.mxu0 0.0
    %98 = vmatprep.mubr.f32.mxu0 0.0
    %99 = vmatmul.mubr.f32.gmra.mxu0 %v32
    %v100 = vpop.f32.mrf.mxu0
    %v101 = vadd.f32 0.0, %v100
    %v102 = vpop.f32.mrf.mxu0
    %103 = vdwg.mxu0
    %v104 = vmul.f32 %v101, %v101
    %vm105 = vcmask 286720
    %v106 = vsel %vm105, %v104, 0.0
    %107 = vadd.xlane.f32.xlu0 %v106
    %v108 = vpop.xlane.xlu0 %107
    %v109 = vrot.slane %v108, 4
    %v110 = vadd.f32 %v108, %v109
    %v111 = vrot.slane %v110, 2
    %v112 = vadd.f32 %v110, %v111
    %v113 = vrot.slane %v112, 1
    %v114 = vadd.f32 %v112, %v113
    %s115 = vtos %v114
    %v116 = vstv %s115
    %v117 = vrsqrt.pop %v116
    %v118 = vmul.f32 %v116, %v117
    %vm119 = vcmp.eq.f32.partialorder %v116, inf
    %v120 = vsel %vm119, %v116, %v118
    %vm121 = vcmp.eq.f32.partialorder %v116, 0.0
    %v122 = vand.u32 %v116, 2147483648
    %v123 = vsel %vm121, %v122, %v120
    %v124 = vadd.f32 %v123, 1e-12
    %v125 = vrcp.pop %v124
    %v126 = vmul.f32 %v101, %v125
    %v127 = vlaneseq
    %v128 = vshrl.u32 %v127, 7
    %v129 = vsub.s32 0, %v128
    %v130 = vrot.slane %v126, %v129
    %v131 = vmul.f32 %v28, %v130
    %vm132 = vcmask 293888
    %v133 = vsel %vm132, %v131, 0.0
    %134 = vadd.xlane.f32.xlu0 %v133
    %v135 = vpop.xlane.xlu0 %134
    %v136 = vmul.f32 %v135, %v135
    %vm137 = vcmask 7168
    %v138 = vsel %vm137, %v136, 0.0
    %139 = vadd.xlane.f32.xlu0 %v138
    %v140 = vpop.xlane.xlu0 %139
    %v141 = vrot.slane %v140, 4
    %v142 = vadd.f32 %v140, %v141
    %v143 = vrot.slane %v142, 2
    %v144 = vadd.f32 %v142, %v143
    %v145 = vrot.slane %v144, 1
    %v146 = vadd.f32 %v144, %v145
    %s147 = vtos %v146
    %v148 = vstv %s147
    %v149 = vrsqrt.pop %v148
    %v150 = vmul.f32 %v148, %v149
    %vm151 = vcmp.eq.f32.partialorder %v148, inf
    %v152 = vsel %vm151, %v148, %v150
    %vm153 = vcmp.eq.f32.partialorder %v148, 0.0
    %v154 = vand.u32 %v148, 2147483648
    %v155 = vsel %vm153, %v154, %v152
    %v156 = vadd.f32 %v155, 1e-12
    %v157 = vrcp.pop %v156
    %v158 = vmul.f32 %v135, %v157
    %v159 = vmul.f32 %v158, %v135
    %v160 = vsel %vm137, %v159, 0.0
    %161 = vadd.xlane.f32.xlu0 %v160
    %v162 = vpop.xlane.xlu0 %161
    %v163 = vrot.slane %v162, 4
    %v164 = vadd.f32 %v162, %v163
    %v165 = vrot.slane %v164, 2
    %v166 = vadd.f32 %v164, %v165
    %v167 = vrot.slane %v166, 1
    %v168 = vadd.f32 %v166, %v167
    %s169 = vtos %v168
    %v170 = vstv %s169
    %vm171 = vcmask 0
    %172 = vst.msk [vmem:[#allocation5] sm:$0x1] %vm171, %v170
    %173 = vst.msk [vmem:[%s3] sm:$0xff] %vm137, %v158
    %174 = vst.msk [vmem:[#allocation6] sm:$0x1] %vm105, %v126
    // Predicated region
    $region14: #{tpu_custom_call.1} parent=1 // pred_check
      _
    $region15: #{tpu_custom_call.1} parent=1 // pred_check_branch
      %176 = sbr.rel (0) target = $region17
    $region16: #{tpu_custom_call.1} parent=1 // pred_region
      %s178 = ssub.s32 16, 16
      %179 = vsyncadd [#allocation4], %s178
      %s181 = sshll.u32 [#allocation5], 4
      %s182 = int_to_ptr.vmem [resolvable:$true] %s181
      %184 = dma.vmem_to_hbm [thread:$0]  %s182, 16, %s2, [#allocation4]
    $region17: #{tpu_custom_call.1} parent=1 // pred_fallthru
      _
    // Predicated region
    $region18: #{tpu_custom_call.1} parent=1 // pred_check
      _
    $region19: #{tpu_custom_call.1} parent=1 // pred_check_branch
      %186 = sbr.rel (0) target = $region21
    $region20: #{tpu_custom_call.1} parent=1 // pred_region
      _
    $region21: #{tpu_custom_call.1} parent=1 // pred_fallthru
      _
    // Predicated region
    $region22: #{tpu_custom_call.1} parent=1 // pred_check
      _
    $region23: #{tpu_custom_call.1} parent=1 // pred_check_branch
      %188 = sbr.rel (0) target = $region25
    $region24: #{tpu_custom_call.1} parent=1 // pred_region
      %s190 = ssub.s32 16, 16
      %191 = vsyncadd [#allocation7], %s190
      %s193 = sshll.u32 [#allocation6], 4
      %s194 = int_to_ptr.vmem [resolvable:$true] %s193
      %196 = dma.vmem_to_hbm [thread:$0]  %s194, 16, %s4, [#allocation7]
    $region25: #{tpu_custom_call.1} parent=1 // pred_fallthru
      _
    // Predicated region
    $region26: #{tpu_custom_call.1} parent=1 // pred_check
      _
    $region27: #{tpu_custom_call.1} parent=1 // pred_check_branch
      %198 = sbr.rel (0) target = $region29
    $region28: #{tpu_custom_call.1} parent=1 // pred_region
      %199 = dma.done [#allocation4], 16
    $region29: #{tpu_custom_call.1} parent=1 // pred_fallthru
      _
    // Predicated region
    $region30: #{tpu_custom_call.1} parent=1 // pred_check
      _
    $region31: #{tpu_custom_call.1} parent=1 // pred_check_branch
      %201 = sbr.rel (0) target = $region33
    $region32: #{tpu_custom_call.1} parent=1 // pred_region
      _
    $region33: #{tpu_custom_call.1} parent=1 // pred_fallthru
      _
    // Predicated region
    $region34: #{tpu_custom_call.1} parent=1 // pred_check
      _
    $region35: #{tpu_custom_call.1} parent=1 // pred_check_branch
      %203 = sbr.rel (0) target = $region37
    $region36: #{tpu_custom_call.1} parent=1 // pred_region
      %204 = dma.done [#allocation7], 16
    $region37: #{tpu_custom_call.1} parent=1 // pred_fallthru
      _
    %205 = vsyncpa [#allocation3], 1
    %206 = vsyncpa [#allocation4], 1
    %207 = vsyncpa [#allocation7], 1

</llo_original>
